<compile_context>
chip_gen: v7x
topology: tpu7x:2x2x1
jax: 0.10.0
libtpu: 0.0.40
codegen_flags: <defaults>
</compile_context>

<pallas_src>
import jax
import jax.numpy as jnp
from jax.experimental import pallas as pl
from jax.experimental.pallas import tpu as pltpu


def _round_up(n, m):
    return ((n + m - 1) // m) * m


def _mlp_kernel(x_ref, w1_ref, w2_ref, w3_ref, bias_ref, o_ref):
    f32 = jnp.float32
    cdt = w1_ref.dtype                       # compute dtype (bf16 by default)

    bias = bias_ref[...]                     # (3, H) f32, VMEM-resident
    b1 = bias[0:1, :]                        # (1, H)
    b2 = bias[1:2, :]                        # (1, H)
    b3 = bias[2:3, 0:1]                      # (1, 1)

    # fc1 + ReLU: x cast to the compute dtype at the dot operand only;
    # MXU dot with f32 accumulation, bias/ReLU stay f32 on the VPU.
    h = jnp.dot(x_ref[...].astype(cdt), w1_ref[...],
                preferred_element_type=f32) + b1
    h = jnp.maximum(h, 0.0)

    # fc2 ("mid") + ReLU.
    mid = jnp.dot(h.astype(cdt), w2_ref[...],
                  preferred_element_type=f32) + b2
    c = jnp.maximum(mid, 0.0)

    # fc3 (out_features == 1) on the MXU: keeps the cross-lane reduce off the
    # XLU (only 2 XLUs on v6e/v7x) -- the MXU is nearly idle at these sizes.
    y = jnp.dot(c.astype(cdt), w3_ref[...], preferred_element_type=f32) + b3
    o_ref[...] = y.astype(o_ref.dtype)


def prepare_params(params, compute_dtype=jnp.bfloat16):
    """One-time (per-parameter-set) packing/casting, hoisted out of the
    per-call path: big weights -> compute dtype, (b1, b2, b3) -> one (3, H)
    f32 block so the kernel takes 5 inputs instead of 7."""
    w1, b1, w2, b2, w3, b3 = params          # weights stored as (in, out)
    H = w1.shape[1]
    bias_pack = jnp.zeros((3, H), jnp.float32)
    bias_pack = bias_pack.at[0, :].set(b1.astype(jnp.float32))
    bias_pack = bias_pack.at[1, :].set(b2.astype(jnp.float32))
    bias_pack = bias_pack.at[2, 0].set(b3.reshape(()).astype(jnp.float32))
    return (w1.astype(compute_dtype),
            w2.astype(compute_dtype),
            w3.reshape(H, 1).astype(compute_dtype),
            bias_pack)


def network_forward(x, prepared_params, *, block_b=2048):
    """y = fc3(relu(fc2(relu(fc1(x))))) as one batch-tiled Pallas kernel."""
    w1_c, w2_c, w3_c, bias_pack = prepared_params
    B, D = x.shape
    H = w1_c.shape[1]

    # Batch tile: multiple of 8 sublanes; for mid/large batches force an even
    # number of >= 2 tiles so the "parallel" axis shards across both v7x
    # TensorCores (no-op on v5e/v6e, which have one TC).
    n_tiles = pl.cdiv(B, block_b)
    if B > 512 and n_tiles == 1:
        n_tiles = 2
    elif n_tiles > 1 and n_tiles % 2 == 1:
        n_tiles += 1
    TB = max(8, _round_up(pl.cdiv(B, n_tiles), 8))
    n_tiles = pl.cdiv(B, TB)                 # re-derive after rounding TB

    isz = jnp.dtype(w1_c.dtype).itemsize
    x_isz = jnp.dtype(x.dtype).itemsize

    flops = 2 * B * (D * H + H * H + H)
    bytes_accessed = (B * (D * x_isz + 4)                # x in, y out
                      + (D * H + H * H + H) * isz        # weights
                      + 3 * H * 4)                       # packed biases

    # Rough VMEM estimate (double-buffered blocks, lane-padded, plus f32
    # activations); raise the scoped limit only when it would be exceeded.
    H_l = max(_round_up(H, 128), 128)
    D_l = max(_round_up(D, 128), 128)
    est_vmem = (2 * TB * D_l * x_isz                     # x tile (2 bufs)
                + 2 * (D * H + H * H + H) * isz          # resident weights
                + 2 * 3 * H_l * 4                        # bias pack
                + 2 * TB * 128 * 4                       # (TB, 1) output
                + 3 * TB * H_l * 4)                      # f32 activations
    vmem_limit = None
    if est_vmem > (16 << 20):
        vmem_limit = min(int(est_vmem) * 5 // 4, 112 << 20)
    # TODO(synk): tile fc2 over a K/N grid axis when 2*H*H*isz approaches
    # v7x's 64 MiB physical VMEM (irrelevant at the module default H=50).

    out = pl.pallas_call(
        _mlp_kernel,
        out_shape=jax.ShapeDtypeStruct((B, 1), jnp.float32),
        grid=(n_tiles,),
        in_specs=[
            pl.BlockSpec((TB, D), lambda i: (i, 0)),   # x: batch-tiled stream
            pl.BlockSpec((D, H), lambda i: (0, 0)),    # w1: VMEM-resident
            pl.BlockSpec((H, H), lambda i: (0, 0)),    # w2: VMEM-resident
            pl.BlockSpec((H, 1), lambda i: (0, 0)),    # w3: VMEM-resident
            pl.BlockSpec((3, H), lambda i: (0, 0)),    # packed biases (f32)
        ],
        out_specs=pl.BlockSpec((TB, 1), lambda i: (i, 0)),
        compiler_params=pltpu.CompilerParams(
            dimension_semantics=("parallel",),
            vmem_limit_bytes=vmem_limit),
        cost_estimate=pl.CostEstimate(
            flops=flops, transcendentals=0, bytes_accessed=bytes_accessed),
    )(x, w1_c, w2_c, w3_c, bias_pack)

    return out


def init_params(key, dim, hidden_size):
    """Deterministic parameter init; weights stored as (in, out)."""
    H = hidden_size
    shapes = [(dim, H), (H,),     # fc1
              (H, H), (H,),       # fc2
              (H, 1), (1,)]       # fc3
    keys = jax.random.split(key, len(shapes))
    return tuple(0.1 * jax.random.normal(k, s, dtype=jnp.float32)
                 for k, s in zip(keys, shapes))


def reference_forward(x, params, compute_dtype=jnp.bfloat16):
    """Pure-JAX reference mirroring the kernel's operand rounding."""
    w1, b1, w2, b2, w3, b3 = params
    f32 = jnp.float32
    hp = jax.lax.Precision.HIGHEST
    r = lambda a: a.astype(compute_dtype).astype(f32)
    h = jnp.maximum(jnp.dot(r(x), r(w1), precision=hp) + b1, 0.0)
    c = jnp.maximum(jnp.dot(r(h), r(w2), precision=hp) + b2, 0.0)
    return jnp.dot(r(c), r(w3), precision=hp) + b3


if __name__ == "__main__":
    key = jax.random.PRNGKey(0)
    k_x, k_p = jax.random.split(key)

    dim = 40          # input feature dim
    hidden = 50       # module default hidden_size=50
    batch = 8

    x = jax.random.normal(k_x, (batch, dim), dtype=jnp.float32)
    params = init_params(k_p, dim, hidden)
    prepared = prepare_params(params)         # one-time cast/pack (hoisted)

    out = network_forward(x, prepared)
    out = jax.block_until_ready(out)

    ref = reference_forward(x, params)
    assert out.shape == (batch, 1)
    assert jnp.allclose(out, ref, atol=2e-4, rtol=2e-4), "mismatch vs reference"

    print("KERNEL_OK")
</pallas_src>

<mosaic_0001>
module attributes {stable_mosaic.version = 11 : i64} {
  func.func @_mlp_kernel(%arg0: i32, %arg1: memref<8x40xf32, #tpu.memory_space<vmem>>, %arg2: memref<40x50xbf16, #tpu.memory_space<vmem>>, %arg3: memref<50x50xbf16, #tpu.memory_space<vmem>>, %arg4: memref<50x1xbf16, #tpu.memory_space<vmem>>, %arg5: memref<3x50xf32, #tpu.memory_space<vmem>>, %arg6: memref<8x1xf32, #tpu.memory_space<vmem>>) attributes {dimension_semantics = [#tpu.dimension_semantics<parallel>], iteration_bounds = array<i64: 1>, scalar_prefetch = 0 : i64, scratch_operands = 0 : i64, tpu.core_type = #tpu.core_type<tc>, window_params = [{transform_indices = @transform_0, window_bounds = array<i64: 8, 40>}, {pipeline_mode = #tpu.pipeline_mode<synchronous>, transform_indices = @transform_1, window_bounds = array<i64: 40, 50>}, {pipeline_mode = #tpu.pipeline_mode<synchronous>, transform_indices = @transform_2, window_bounds = array<i64: 50, 50>}, {pipeline_mode = #tpu.pipeline_mode<synchronous>, transform_indices = @transform_3, window_bounds = array<i64: 50, 1>}, {pipeline_mode = #tpu.pipeline_mode<synchronous>, transform_indices = @transform_4, window_bounds = array<i64: 3, 50>}, {transform_indices = @transform_5, window_bounds = array<i64: 8, 1>}]} {
    %c0 = arith.constant 0 : index
    %c0_0 = arith.constant 0 : index
    %0 = vector.load %arg5[%c0, %c0_0] : memref<3x50xf32, #tpu.memory_space<vmem>>, vector<3x50xf32>
    %1 = vector.extract_strided_slice %0 {offsets = [0, 0], sizes = [1, 50], strides = [1, 1]} : vector<3x50xf32> to vector<1x50xf32>
    %2 = vector.extract_strided_slice %0 {offsets = [1, 0], sizes = [1, 50], strides = [1, 1]} : vector<3x50xf32> to vector<1x50xf32>
    %3 = vector.extract_strided_slice %0 {offsets = [2, 0], sizes = [1, 1], strides = [1, 1]} : vector<3x50xf32> to vector<1x1xf32>
    %c0_1 = arith.constant 0 : index
    %c0_2 = arith.constant 0 : index
    %4 = vector.load %arg1[%c0_1, %c0_2] : memref<8x40xf32, #tpu.memory_space<vmem>>, vector<8x40xf32>
    %5 = arith.truncf %4 : vector<8x40xf32> to vector<8x40xbf16>
    %c0_3 = arith.constant 0 : index
    %c0_4 = arith.constant 0 : index
    %6 = vector.load %arg2[%c0_3, %c0_4] : memref<40x50xbf16, #tpu.memory_space<vmem>>, vector<40x50xbf16>
    %cst = arith.constant dense<0.000000e+00> : vector<8x50xf32>
    %7 = tpu.matmul %5, %6, %cst {dimension_numbers = #tpu.dot_dimension_numbers<[1], [0], [0], [1], [0, 0, 1, 1], [], []>} : vector<8x40xbf16>, vector<40x50xbf16>, vector<8x50xf32> -> vector<8x50xf32>
    %8 = vector.broadcast %1 : vector<1x50xf32> to vector<8x50xf32>
    %9 = arith.addf %7, %8 : vector<8x50xf32>
    %cst_5 = arith.constant 0.000000e+00 : f32
    %10 = vector.broadcast %cst_5 : f32 to vector<8x50xf32>
    %11 = arith.maximumf %9, %10 : vector<8x50xf32>
    %12 = arith.truncf %11 : vector<8x50xf32> to vector<8x50xbf16>
    %c0_6 = arith.constant 0 : index
    %c0_7 = arith.constant 0 : index
    %13 = vector.load %arg3[%c0_6, %c0_7] : memref<50x50xbf16, #tpu.memory_space<vmem>>, vector<50x50xbf16>
    %cst_8 = arith.constant dense<0.000000e+00> : vector<8x50xf32>
    %14 = tpu.matmul %12, %13, %cst_8 {dimension_numbers = #tpu.dot_dimension_numbers<[1], [0], [0], [1], [0, 0, 1, 1], [], []>} : vector<8x50xbf16>, vector<50x50xbf16>, vector<8x50xf32> -> vector<8x50xf32>
    %15 = vector.broadcast %2 : vector<1x50xf32> to vector<8x50xf32>
    %16 = arith.addf %14, %15 : vector<8x50xf32>
    %cst_9 = arith.constant 0.000000e+00 : f32
    %17 = vector.broadcast %cst_9 : f32 to vector<8x50xf32>
    %18 = arith.maximumf %16, %17 : vector<8x50xf32>
    %19 = arith.truncf %18 : vector<8x50xf32> to vector<8x50xbf16>
    %c0_10 = arith.constant 0 : index
    %c0_11 = arith.constant 0 : index
    %20 = vector.load %arg4[%c0_10, %c0_11] : memref<50x1xbf16, #tpu.memory_space<vmem>>, vector<50x1xbf16>
    %cst_12 = arith.constant dense<0.000000e+00> : vector<8x1xf32>
    %21 = tpu.matmul %19, %20, %cst_12 {dimension_numbers = #tpu.dot_dimension_numbers<[1], [0], [0], [1], [0, 0, 1, 1], [], []>} : vector<8x50xbf16>, vector<50x1xbf16>, vector<8x1xf32> -> vector<8x1xf32>
    %22 = vector.broadcast %3 : vector<1x1xf32> to vector<8x1xf32>
    %23 = arith.addf %21, %22 : vector<8x1xf32>
    %c0_13 = arith.constant 0 : index
    %c0_14 = arith.constant 0 : index
    %24 = vector.load %arg6[%c0_13, %c0_14] : memref<8x1xf32, #tpu.memory_space<vmem>>, vector<8x1xf32>
    tpu.vector_store %arg6[%c0_13, %c0_14], %23 {strides = array<i32>} : memref<8x1xf32, #tpu.memory_space<vmem>>, vector<8x1xf32>,
    return
  }
  func.func @transform_0(%arg0: i32) -> (i32, i32) {
    %c0_i32 = arith.constant 0 : i32
    %c0_i32_0 = arith.constant 0 : i32
    return %arg0, %c0_i32 : i32, i32
  }
  func.func @transform_1(%arg0: i32) -> (i32, i32) {
    %c0_i32 = arith.constant 0 : i32
    %c0_i32_0 = arith.constant 0 : i32
    %c0_i32_1 = arith.constant 0 : i32
    return %c0_i32, %c0_i32_0 : i32, i32
  }
  func.func @transform_2(%arg0: i32) -> (i32, i32) {
    %c0_i32 = arith.constant 0 : i32
    %c0_i32_0 = arith.constant 0 : i32
    %c0_i32_1 = arith.constant 0 : i32
    return %c0_i32, %c0_i32_0 : i32, i32
  }
  func.func @transform_3(%arg0: i32) -> (i32, i32) {
    %c0_i32 = arith.constant 0 : i32
    %c0_i32_0 = arith.constant 0 : i32
    %c0_i32_1 = arith.constant 0 : i32
    return %c0_i32, %c0_i32_0 : i32, i32
  }
  func.func @transform_4(%arg0: i32) -> (i32, i32) {
    %c0_i32 = arith.constant 0 : i32
    %c0_i32_0 = arith.constant 0 : i32
    %c0_i32_1 = arith.constant 0 : i32
    return %c0_i32, %c0_i32_0 : i32, i32
  }
  func.func @transform_5(%arg0: i32) -> (i32, i32) {
    %c0_i32 = arith.constant 0 : i32
    %c0_i32_0 = arith.constant 0 : i32
    return %arg0, %c0_i32 : i32, i32
  }
}

</mosaic_0001>

<llo_original>
// kernel: tpu_custom_call.1
$region0: #{tpu_custom_call.1}
  #allocation0 [shape = 'u32[]', space=smem, size = 0x4, offset = 0x4, fixed_abs, tag = 'smem constant byte address 0x4 - core index']
  #allocation1 [shape = 'u32[144,128]{1,0:T(1,128)}', space=vmem, size = 0x12000, scoped, tag = 'internal scratch']
  %s0 = inlined_call_operand.vmem [shape: f32[8,40], index: 0, kind: input, shape index: {}]
  %s1 = inlined_call_operand.hbm [shape: bf16[40,50], index: 1, kind: input, shape index: {}]
  %s2 = inlined_call_operand.vmem [shape: bf16[50,50], index: 2, kind: input, shape index: {}]
  %s3 = inlined_call_operand.vmem [shape: bf16[50,1], index: 3, kind: input, shape index: {}]
  %s4 = inlined_call_operand.vmem [shape: f32[3,50], index: 4, kind: input, shape index: {}]
  %s5 = inlined_call_operand.vmem [shape: f32[8,1], index: 5, kind: output, shape index: {}]
  %s6 = sld [smem:[#allocation0]]
  $region34: #{tpu_custom_call.1} parent=0
    _
  %s8 = ssub.s32 1, %s6
  %s9 = scalar_select 0, %s8, %s6
  $region1: #{tpu_custom_call.1} parent=0
    #allocation2 [shape = 'u8[10240]{0}', space=vmem, size = 0x2800, scoped, tag = 'input window, operand 1, single buffered']
    #allocation3 [shape = 's32[1]{0}', space=sflag, size = 0x4, scoped, tag = 'scoped memory for tpu_custom_call.1']
    %10 = vsyncpa [#allocation3], 0
    // Predicated region
    $region2: #{tpu_custom_call.1} parent=1 // pred_check
      _
    $region3: #{tpu_custom_call.1} parent=1 // pred_check_branch
      %12 = sbr.rel (0) target = $region5
    $region4: #{tpu_custom_call.1} parent=1 // pred_region
      _
    $region5: #{tpu_custom_call.1} parent=1 // pred_fallthru
      _
    // Predicated region
    $region6: #{tpu_custom_call.1} parent=1 // pred_check
      _
    $region7: #{tpu_custom_call.1} parent=1 // pred_check_branch
      %14 = sbr.rel (0) target = $region9
    $region8: #{tpu_custom_call.1} parent=1 // pred_region
      %s16 = ssub.s32 320, 320
      %17 = vsyncadd [#allocation3], %s16
      %s18 = sshll.u32 [#allocation2], 4
      %s19 = int_to_ptr.vmem [resolvable:$true] %s18
      %24 = dma.hbm_to_vmem [thread:$0]  %s1, 320, %s19, [#allocation3], 64, 64, 4
    $region9: #{tpu_custom_call.1} parent=1 // pred_fallthru
      _
    // Predicated region
    $region10: #{tpu_custom_call.1} parent=1 // pred_check
      _
    $region11: #{tpu_custom_call.1} parent=1 // pred_check_branch
      %26 = sbr.rel (0) target = $region13
    $region12: #{tpu_custom_call.1} parent=1 // pred_region
      _
    $region13: #{tpu_custom_call.1} parent=1 // pred_fallthru
      _
    // Predicated region
    $region14: #{tpu_custom_call.1} parent=1 // pred_check
      _
    $region15: #{tpu_custom_call.1} parent=1 // pred_check_branch
      %28 = sbr.rel (0) target = $region17
    $region16: #{tpu_custom_call.1} parent=1 // pred_region
      _
    $region17: #{tpu_custom_call.1} parent=1 // pred_fallthru
      _
    // Predicated region
    $region18: #{tpu_custom_call.1} parent=1 // pred_check
      _
    $region19: #{tpu_custom_call.1} parent=1 // pred_check_branch
      %30 = sbr.rel (0) target = $region21
    $region20: #{tpu_custom_call.1} parent=1 // pred_region
      _
    $region21: #{tpu_custom_call.1} parent=1 // pred_fallthru
      _
    // Predicated region
    $region22: #{tpu_custom_call.1} parent=1 // pred_check
      _
    $region23: #{tpu_custom_call.1} parent=1 // pred_check_branch
      %32 = sbr.rel (0) target = $region25
    $region24: #{tpu_custom_call.1} parent=1 // pred_region
      %33 = dma.done [#allocation3], 320
    $region25: #{tpu_custom_call.1} parent=1 // pred_fallthru
      _
    %v35 = vld [vmem:[%s4] sm:$0x7]
    %v36 = vld [vmem:[%s0] sm:$0xff]
    %v37 = vpack.c.bf16 %v36, %v36
    %v38 = vld [vmem:[#allocation2] sm:$0xf]
    %v39 = vld [vmem:[#allocation2 + $0x4] sm:$0xf]
    %v40 = vld [vmem:[#allocation2 + $0x8] sm:$0xf]
    %v41 = vld [vmem:[#allocation2 + $0xc] sm:$0xf]
    %v42 = vld [vmem:[#allocation2 + $0x10] sm:$0xf]
    %v43 = vlaneseq
    %v44 = vshrl.u32 %v43, 7
    %v45 = vsub.s32 0, %v44
    %v46 = vrot.slane %v35, %v45
    %v52 = vunpack.c.l.b16 %v38
    %v53 = vunpack.c.l.b16 %v39
    %v54 = vunpack.c.l.b16 %v40
    %v55 = vunpack.c.l.b16 %v41
    %v56 = vunpack.c.l.b16 %v42
    %v57 = vpack.c.b16 %v53, %v52
    %v58 = vpack.c.b16 %v55, %v54
    %v59 = vpack.c.b16 %v56, %v56
    %vm62 = vcmask 326656
    %v64 = vsel %vm62, %v37, 0
    %vm66 = vcmask 1043456
    %v68 = vsel %vm66, %v59, 0
    %70 = vmatprep.subr.bf16.mxu0 0
    %71 = vmatpush1.bf16.msra.mxu0 %v57
    %72 = vmatprep.subr.bf16.mxu0 0
    %73 = vmatpush1.bf16.msra.mxu0 %v58
    %74 = vmatprep.subr.bf16.mxu0 0
    %75 = vmatpush1.bf16.msra.mxu0 %v68
    %76 = vmatprep.subr.bf16.mxu0 0
    %77 = vmatpush1.bf16.msra.mxu0 0
    %78 = vmatprep.subr.bf16.mxu0 0
    %79 = vmatpush1.bf16.msra.mxu0 0
    %80 = vmatprep.subr.bf16.mxu0 0
    %81 = vmatpush1.bf16.msra.mxu0 0
    %82 = vmatprep.subr.bf16.mxu0 0
    %83 = vmatpush1.bf16.msra.mxu0 0
    %84 = vmatprep.subr.bf16.mxu0 0
    %85 = vmatpush1.bf16.msra.mxu0 0
    %86 = vmatprep.subr.bf16.mxu0 0
    %87 = vmatpush1.bf16.msra.mxu0 0
    %88 = vmatprep.subr.bf16.mxu0 0
    %89 = vmatpush1.bf16.msra.mxu0 0
    %90 = vmatprep.subr.bf16.mxu0 0
    %91 = vmatpush1.bf16.msra.mxu0 0
    %92 = vmatprep.subr.bf16.mxu0 0
    %93 = vmatpush1.bf16.msra.mxu0 0
    %94 = vmatprep.subr.bf16.mxu0 0
    %95 = vmatpush1.bf16.msra.mxu0 0
    %96 = vmatprep.subr.bf16.mxu0 0
    %97 = vmatpush1.bf16.msra.mxu0 0
    %98 = vmatprep.subr.bf16.mxu0 0
    %99 = vmatpush1.bf16.msra.mxu0 0
    %100 = vmatprep.subr.bf16.mxu0 0
    %101 = vmatpush1.bf16.msra.mxu0 0
    %102 = vmatprep.mubr.bf16.mxu0 0
    %103 = vmatmul.mubr.bf16.gmra.mrb[0].mxu0 %v64
    %v104 = vpop.f32.mrb[0].mxu0
    %v105 = vadd.f32 %v46, %v104
    %v106 = vpop.f32.mrb[0].mxu0
    %v107 = vpop.f32.mrb[0].mxu0
    %v108 = vpop.f32.mrb[0].mxu0
    %109 = vdwg.mxu0
    %v110 = vmax.f32 %v105, 0.0
    %v111 = vpack.c.bf16 %v110, %v110
    %v112 = vld [vmem:[%s2] sm:$0xf]
    %v113 = vld [vmem:[%s2 + $0x4] sm:$0xf]
    %v114 = vld [vmem:[%s2 + $0x8] sm:$0xf]
    %v115 = vld [vmem:[%s2 + $0xc] sm:$0xf]
    %v116 = vld [vmem:[%s2 + $0x10] sm:$0xf]
    %v117 = vld [vmem:[%s2 + $0x14] sm:$0xf]
    %v118 = vld [vmem:[%s2 + $0x18] sm:$0x1]
    %v119 = vlaneseq
    %v120 = vshrl.u32 %v119, 7
    %v121 = vsub.s32 1, %v120
    %v122 = vrot.slane %v35, %v121
    %v130 = vunpack.c.l.b16 %v112
    %v131 = vunpack.c.l.b16 %v113
    %v132 = vunpack.c.l.b16 %v114
    %v133 = vunpack.c.l.b16 %v115
    %v134 = vunpack.c.l.b16 %v116
    %v135 = vunpack.c.l.b16 %v117
    %v136 = vunpack.c.l.b16 %v118
    %v137 = vpack.c.b16 %v131, %v130
    %v138 = vpack.c.b16 %v133, %v132
    %v139 = vpack.c.b16 %v135, %v134
    %v140 = vpack.c.b16 %v136, %v136
    %vm144 = vcmask 408576
    %v146 = vsel %vm144, %v111, 0
    %vm148 = vcmask 1040384
    %v150 = vsel %vm148, %v140, 0
    %152 = vmatprep.subr.bf16.mxu0 0
    %153 = vmatpush1.bf16.msra.mxu0 %v137
    %154 = vmatprep.subr.bf16.mxu0 0
    %155 = vmatpush1.bf16.msra.mxu0 %v138
    %156 = vmatprep.subr.bf16.mxu0 0
    %157 = vmatpush1.bf16.msra.mxu0 %v139
    %158 = vmatprep.subr.bf16.mxu0 0
    %159 = vmatpush1.bf16.msra.mxu0 %v150
    %160 = vmatprep.subr.bf16.mxu0 0
    %161 = vmatpush1.bf16.msra.mxu0 0
    %162 = vmatprep.subr.bf16.mxu0 0
    %163 = vmatpush1.bf16.msra.mxu0 0
    %164 = vmatprep.subr.bf16.mxu0 0
    %165 = vmatpush1.bf16.msra.mxu0 0
    %166 = vmatprep.subr.bf16.mxu0 0
    %167 = vmatpush1.bf16.msra.mxu0 0
    %168 = vmatprep.subr.bf16.mxu0 0
    %169 = vmatpush1.bf16.msra.mxu0 0
    %170 = vmatprep.subr.bf16.mxu0 0
    %171 = vmatpush1.bf16.msra.mxu0 0
    %172 = vmatprep.subr.bf16.mxu0 0
    %173 = vmatpush1.bf16.msra.mxu0 0
    %174 = vmatprep.subr.bf16.mxu0 0
    %175 = vmatpush1.bf16.msra.mxu0 0
    %176 = vmatprep.subr.bf16.mxu0 0
    %177 = vmatpush1.bf16.msra.mxu0 0
    %178 = vmatprep.subr.bf16.mxu0 0
    %179 = vmatpush1.bf16.msra.mxu0 0
    %180 = vmatprep.subr.bf16.mxu0 0
    %181 = vmatpush1.bf16.msra.mxu0 0
    %182 = vmatprep.subr.bf16.mxu0 0
    %183 = vmatpush1.bf16.msra.mxu0 0
    %184 = vmatprep.mubr.bf16.mxu0 0
    %185 = vmatmul.mubr.bf16.gmra.mrb[0].mxu0 %v146
    %v186 = vpop.f32.mrb[0].mxu0
    %v187 = vadd.f32 %v122, %v186
    %v188 = vpop.f32.mrb[0].mxu0
    %v189 = vpop.f32.mrb[0].mxu0
    %v190 = vpop.f32.mrb[0].mxu0
    %191 = vdwg.mxu0
    %v192 = vmax.f32 %v187, 0.0
    %v193 = vpack.c.bf16 %v192, %v192
    %v194 = vld [vmem:[%s3] sm:$0xf]
    %v195 = vld [vmem:[%s3 + $0x4] sm:$0xf]
    %v196 = vld [vmem:[%s3 + $0x8] sm:$0xf]
    %v197 = vld [vmem:[%s3 + $0xc] sm:$0xf]
    %v198 = vld [vmem:[%s3 + $0x10] sm:$0xf]
    %v199 = vld [vmem:[%s3 + $0x14] sm:$0xf]
    %v200 = vld [vmem:[%s3 + $0x18] sm:$0x1]
    %v201 = vlaneseq
    %v202 = vshrl.u32 %v201, 7
    %v203 = vsub.s32 2, %v202
    %v204 = vrot.slane %v35, %v203
    %v212 = vunpack.c.l.b16 %v194
    %v213 = vunpack.c.l.b16 %v195
    %v214 = vunpack.c.l.b16 %v196
    %v215 = vunpack.c.l.b16 %v197
    %v216 = vunpack.c.l.b16 %v198
    %v217 = vunpack.c.l.b16 %v199
    %v218 = vunpack.c.l.b16 %v200
    %v219 = vpack.c.b16 %v213, %v212
    %v220 = vpack.c.b16 %v215, %v214
    %v221 = vpack.c.b16 %v217, %v216
    %v222 = vpack.c.b16 %v218, %v218
    %v227 = vsel %vm144, %v193, 0
    %v230 = vsel %vm148, %v222, 0
    %232 = vmatprep.subr.bf16.mxu0 0
    %233 = vmatpush1.bf16.msra.mxu0 %v219
    %234 = vmatprep.subr.bf16.mxu0 0
    %235 = vmatpush1.bf16.msra.mxu0 %v220
    %236 = vmatprep.subr.bf16.mxu0 0
    %237 = vmatpush1.bf16.msra.mxu0 %v221
    %238 = vmatprep.subr.bf16.mxu0 0
    %239 = vmatpush1.bf16.msra.mxu0 %v230
    %240 = vmatprep.subr.bf16.mxu0 0
    %241 = vmatpush1.bf16.msra.mxu0 0
    %242 = vmatprep.subr.bf16.mxu0 0
    %243 = vmatpush1.bf16.msra.mxu0 0
    %244 = vmatprep.subr.bf16.mxu0 0
    %245 = vmatpush1.bf16.msra.mxu0 0
    %246 = vmatprep.subr.bf16.mxu0 0
    %247 = vmatpush1.bf16.msra.mxu0 0
    %248 = vmatprep.subr.bf16.mxu0 0
    %249 = vmatpush1.bf16.msra.mxu0 0
    %250 = vmatprep.subr.bf16.mxu0 0
    %251 = vmatpush1.bf16.msra.mxu0 0
    %252 = vmatprep.subr.bf16.mxu0 0
    %253 = vmatpush1.bf16.msra.mxu0 0
    %254 = vmatprep.subr.bf16.mxu0 0
    %255 = vmatpush1.bf16.msra.mxu0 0
    %256 = vmatprep.subr.bf16.mxu0 0
    %257 = vmatpush1.bf16.msra.mxu0 0
    %258 = vmatprep.subr.bf16.mxu0 0
    %259 = vmatpush1.bf16.msra.mxu0 0
    %260 = vmatprep.subr.bf16.mxu0 0
    %261 = vmatpush1.bf16.msra.mxu0 0
    %262 = vmatprep.subr.bf16.mxu0 0
    %263 = vmatpush1.bf16.msra.mxu0 0
    %264 = vmatprep.mubr.bf16.mxu0 0
    %265 = vmatmul.mubr.bf16.gmra.mrb[0].mxu0 %v227
    %v266 = vpop.f32.mrb[0].mxu0
    %v267 = vadd.f32 %v204, %v266
    %v268 = vpop.f32.mrb[0].mxu0
    %v269 = vpop.f32.mrb[0].mxu0
    %v270 = vpop.f32.mrb[0].mxu0
    %271 = vdwg.mxu0
    %vm272 = vcmask 7168
    %273 = vst.msk [vmem:[%s5] sm:$0xff] %vm272, %v267
    // Predicated region
    $region26: #{tpu_custom_call.1} parent=1 // pred_check
      _
    $region27: #{tpu_custom_call.1} parent=1 // pred_check_branch
      %275 = sbr.rel (0) target = $region29
    $region28: #{tpu_custom_call.1} parent=1 // pred_region
      _
    $region29: #{tpu_custom_call.1} parent=1 // pred_fallthru
      _
    // Predicated region
    $region30: #{tpu_custom_call.1} parent=1 // pred_check
      _
    $region31: #{tpu_custom_call.1} parent=1 // pred_check_branch
      %277 = sbr.rel (0) target = $region33
    $region32: #{tpu_custom_call.1} parent=1 // pred_region
      _
    $region33: #{tpu_custom_call.1} parent=1 // pred_fallthru
      _
    %278 = vsyncpa [#allocation3], 1

</llo_original>
